<compile_context>
chip_gen: v6e
topology: v6e:2x2x1
jax: 0.10.0
libtpu: 0.0.40
codegen_flags: <defaults>
</compile_context>

<pallas_src>
import functools

import jax
import jax.numpy as jnp
from jax.experimental import pallas as pl
from jax.experimental.pallas import tpu as pltpu

_SQRT_HALF = 0.7071067811865476  # 1/sqrt(2)


def _round_up(x, n):
    return (x + n - 1) // n * n


def _chip_info():
    """Best-effort chip-generation query: lane granularity, VMEM, #TensorCores."""
    try:
        kind = jax.devices()[0].device_kind.lower()
    except Exception:  # pragma: no cover - defensive
        kind = ""
    if "v7" in kind:
        return {"min_lane": 256, "vmem": 64 * 1024 * 1024, "two_cores": True}
    if "v5" in kind:
        return {"min_lane": 128, "vmem": 128 * 1024 * 1024, "two_cores": False}
    # v6e and unknown chips: 256-wide MXU tiles, 128 MiB VMEM, single TC.
    return {"min_lane": 256, "vmem": 128 * 1024 * 1024, "two_cores": False}


def _gelu_exact(h):
    # erf-based GELU in f32 (matches torch.nn.GELU() default)
    return 0.5 * h * (1.0 + jax.lax.erf(h * _SQRT_HALF))


# ---------------------------------------------------------------------------
# Kernels
# ---------------------------------------------------------------------------
def _mlp_resident_kernel(x_ref, w1_ref, b1_ref, w2_ref, b2_ref, o_ref):
    # Weights have constant index maps -> fetched from HBM once, VMEM-resident.
    # x_ref: (tm, IN) bf16   w1_ref: (IN, HID) bf16   b1_ref: (1, HID) f32
    # w2_ref: (HID, OUT) bf16   b2_ref: (1, OUT) f32   o_ref: (tm, OUT)
    h = jnp.dot(x_ref[...], w1_ref[...], preferred_element_type=jnp.float32)
    h = _gelu_exact(h + b1_ref[...])
    y = jnp.dot(h.astype(w2_ref.dtype), w2_ref[...],
                preferred_element_type=jnp.float32)
    # fc2 bias; dropout(p=0.0) is the identity
    o_ref[...] = (y + b2_ref[...]).astype(o_ref.dtype)


def _mlp_stream_kernel(x_ref, w1_ref, b1_ref, w2_ref, b2_ref, o_ref, acc_ref):
    # Hidden dim streamed as a reduction axis; f32 accumulator for fc2 partials.
    # x_ref: (tm, IN) bf16   w1_ref: (IN, th) bf16   b1_ref: (1, th) f32
    # w2_ref: (th, OUT) bf16 b2_ref: (1, OUT) f32    acc_ref: (tm, OUT) f32
    h_idx = pl.program_id(1)

    h = jnp.dot(x_ref[...], w1_ref[...], preferred_element_type=jnp.float32)
    h = _gelu_exact(h + b1_ref[...])
    part = jnp.dot(h.astype(w2_ref.dtype), w2_ref[...],
                   preferred_element_type=jnp.float32)

    @pl.when(h_idx == 0)
    def _():
        acc_ref[...] = part          # direct write: no zero-init + add pass

    @pl.when(h_idx != 0)
    def _():
        acc_ref[...] += part

    @pl.when(h_idx == pl.num_programs(1) - 1)
    def _():
        # fc2 bias; dropout(p=0.0) is the identity
        o_ref[...] = (acc_ref[...] + b2_ref[...]).astype(o_ref.dtype)


# ---------------------------------------------------------------------------
# Tile / mode selection
# ---------------------------------------------------------------------------
def _select_tiles(m, in_p, hid_p, out_p, out_isz, vmem_cap, prefer_multi,
                  min_lane, force_th=None, force_tm=None):
    """Returns (tm, th). th is None => resident-weights mode."""
    budget = int(0.70 * vmem_cap)  # leave headroom under the 0.85*cap vmem limit
    m16 = _round_up(m, 16)         # bf16 sublane tiling: row tiles multiple of 16

    cands = [t for t in (1024, 512, 256, 128, 64, 32, 16) if t <= m16] or [m16]
    if force_tm is not None:
        cands = [min(_round_up(max(force_tm, 16), 16), m16)]
    # Prefer >=2 row tiles so the "parallel" axis splits across v7x TensorCores.
    multi = [t for t in cands if -(-m16 // t) >= 2]
    pools = (multi, cands) if (prefer_multi and multi) else (cands,)

    def resident_bytes(tm):
        return (2 * (tm * in_p * 2 + tm * out_p * out_isz)                 # x/out tiles
                + 2 * (in_p * hid_p * 2 + hid_p * 4
                       + hid_p * out_p * 2 + out_p * 4)                    # weights/biases
                + tm * hid_p * 6 + tm * out_p * 4)                         # intermediates

    def stream_bytes(tm, th):
        return (2 * (tm * in_p * 2 + in_p * th * 2 + th * 4
                     + th * out_p * 2 + out_p * 4 + tm * out_p * out_isz)
                + tm * out_p * 4 + tm * th * 6)

    if force_th is None:
        # Prefer fully VMEM-resident weights (fetched from HBM exactly once).
        for pool in pools:
            for tm in pool:
                if resident_bytes(tm) <= budget:
                    return tm, None
        th_cands = [t for t in (512, 256, 128)
                    if t >= min_lane and hid_p % t == 0]
    else:
        th_cands = [force_th]

    for pool in pools:
        for tm in pool:
            for th in th_cands:
                if stream_bytes(tm, th) <= budget:
                    return tm, th
    return cands[-1], th_cands[-1]


# ---------------------------------------------------------------------------
# Wrappers
# ---------------------------------------------------------------------------
def prepare_weights(w1, b1, w2, b2):
    """Pad + cast parameters ONCE (at module-init time), not per forward call.
    w1: (in, hidden), w2: (hidden, out) -- pre-transposed vs nn.Linear weights."""
    g = _chip_info()["min_lane"]
    in_f, hid_f = w1.shape
    out_f = w2.shape[1]
    in_p, hid_p, out_p = _round_up(in_f, g), _round_up(hid_f, g), _round_up(out_f, g)
    w1_p = jnp.pad(w1, ((0, in_p - in_f), (0, hid_p - hid_f))).astype(jnp.bfloat16)
    w2_p = jnp.pad(w2, ((0, hid_p - hid_f), (0, out_p - out_f))).astype(jnp.bfloat16)
    b1_p = jnp.pad(b1, (0, hid_p - hid_f)).astype(jnp.float32).reshape(1, hid_p)
    b2_p = jnp.pad(b2, (0, out_p - out_f)).astype(jnp.float32).reshape(1, out_p)
    return w1_p, b1_p, w2_p, b2_p, out_f


@functools.partial(jax.jit, static_argnames=("out_features", "tm", "th"))
def mlp_forward(x, w1_p, b1_p, w2_p, b2_p, *, out_features, tm=None, th=None):
    """x: (batch, seq, in_features); padded/cast weights from prepare_weights().
    Returns (batch, seq, out_features) in x.dtype."""
    batch, seq, in_f = x.shape
    in_p, hid_p = w1_p.shape
    out_p = w2_p.shape[1]
    out_dtype = x.dtype
    out_isz = jnp.dtype(out_dtype).itemsize

    info = _chip_info()
    m = batch * seq
    sel_tm, sel_th = _select_tiles(
        m, in_p, hid_p, out_p, out_isz,
        vmem_cap=info["vmem"], prefer_multi=info["two_cores"],
        min_lane=info["min_lane"], force_th=th, force_tm=tm)
    assert sel_th is None or hid_p % sel_th == 0

    m_p = _round_up(m, sel_tm)
    vmem_limit = int(0.85 * info["vmem"])

    # Pad activations (zero padding is exact for these matmuls) and cast to bf16.
    x2d = x.reshape(m, in_f)
    x2d = jnp.pad(x2d, ((0, m_p - m), (0, in_p - in_f))).astype(jnp.bfloat16)

    if sel_th is None:
        # ---- RESIDENT mode: weights fetched from HBM once, no reduction axis.
        out2d = pl.pallas_call(
            _mlp_resident_kernel,
            out_shape=jax.ShapeDtypeStruct((m_p, out_p), out_dtype),
            grid=(m_p // sel_tm,),
            in_specs=[
                pl.BlockSpec((sel_tm, in_p), lambda i: (i, 0)),
                pl.BlockSpec((in_p, hid_p), lambda i: (0, 0)),   # resident
                pl.BlockSpec((1, hid_p), lambda i: (0, 0)),      # resident
                pl.BlockSpec((hid_p, out_p), lambda i: (0, 0)),  # resident
                pl.BlockSpec((1, out_p), lambda i: (0, 0)),      # resident
            ],
            out_specs=pl.BlockSpec((sel_tm, out_p), lambda i: (i, 0)),
            compiler_params=pltpu.CompilerParams(
                dimension_semantics=("parallel",),
                vmem_limit_bytes=vmem_limit,
            ),
        )(x2d, w1_p, b1_p, w2_p, b2_p)
    else:
        # ---- STREAM mode: hidden dim tiled as a reduction ("arbitrary") axis.
        out2d = pl.pallas_call(
            _mlp_stream_kernel,
            out_shape=jax.ShapeDtypeStruct((m_p, out_p), out_dtype),
            grid=(m_p // sel_tm, hid_p // sel_th),
            in_specs=[
                pl.BlockSpec((sel_tm, in_p), lambda i, h: (i, 0)),
                pl.BlockSpec((in_p, sel_th), lambda i, h: (0, h)),
                pl.BlockSpec((1, sel_th), lambda i, h: (0, h)),
                pl.BlockSpec((sel_th, out_p), lambda i, h: (h, 0)),
                pl.BlockSpec((1, out_p), lambda i, h: (0, 0)),
            ],
            out_specs=pl.BlockSpec((sel_tm, out_p), lambda i, h: (i, 0)),
            scratch_shapes=[pltpu.VMEM((sel_tm, out_p), jnp.float32)],
            compiler_params=pltpu.CompilerParams(
                dimension_semantics=("parallel", "arbitrary"),
                vmem_limit_bytes=vmem_limit,
            ),
        )(x2d, w1_p, b1_p, w2_p, b2_p)

    return out2d[:m, :out_features].reshape(batch, seq, out_features)


def _reference(x, w1, b1, w2, b2):
    """Pure-JAX reference mimicking the kernel's bf16 matmul / f32 accumulate path."""
    h = jnp.einsum("bsi,ih->bsh", x.astype(jnp.bfloat16), w1.astype(jnp.bfloat16),
                   preferred_element_type=jnp.float32) + b1
    h = _gelu_exact(h)
    y = jnp.einsum("bsh,ho->bso", h.astype(jnp.bfloat16), w2.astype(jnp.bfloat16),
                   preferred_element_type=jnp.float32) + b2
    return y


if __name__ == "__main__":
    batch, seq = 2, 8
    in_features, hidden_features, out_features = 32, 64, 32

    key = jax.random.PRNGKey(0)
    kx, k1, k2, k3, k4 = jax.random.split(key, 5)
    x = jax.random.normal(kx, (batch, seq, in_features), jnp.float32)
    w1 = jax.random.normal(k1, (in_features, hidden_features), jnp.float32) / jnp.sqrt(
        jnp.float32(in_features))
    b1 = jax.random.normal(k2, (hidden_features,), jnp.float32) * 0.02
    w2 = jax.random.normal(k3, (hidden_features, out_features), jnp.float32) / jnp.sqrt(
        jnp.float32(hidden_features))
    b2 = jax.random.normal(k4, (out_features,), jnp.float32) * 0.02

    # Pad + cast the weights once ("module init"), not per forward call.
    w1_p, b1_p, w2_p, b2_p, out_f = prepare_weights(w1, b1, w2, b2)

    y_ref = _reference(x, w1, b1, w2, b2)

    # 1) Default path: weights VMEM-resident, single grid axis over rows.
    y = mlp_forward(x, w1_p, b1_p, w2_p, b2_p, out_features=out_f)
    y = jax.block_until_ready(y)
    assert y.shape == (batch, seq, out_features)
    assert jnp.allclose(y, y_ref, atol=2e-2, rtol=2e-2), "resident path mismatch"

    # 2) Forced hidden-streaming path (exercises the accumulator kernel used
    #    when the weights do not fit in VMEM).
    y2 = mlp_forward(x, w1_p, b1_p, w2_p, b2_p, out_features=out_f, th=128)
    y2 = jax.block_until_ready(y2)
    assert jnp.allclose(y2, y_ref, atol=2e-2, rtol=2e-2), "streaming path mismatch"

    print("KERNEL_OK")
</pallas_src>

<mosaic_0001>
module attributes {stable_mosaic.version = 11 : i64} {
  func.func @_mlp_resident_kernel(%arg0: i32, %arg1: memref<16x256xbf16, #tpu.memory_space<vmem>>, %arg2: memref<256x256xbf16, #tpu.memory_space<vmem>>, %arg3: memref<1x256xf32, #tpu.memory_space<vmem>>, %arg4: memref<256x256xbf16, #tpu.memory_space<vmem>>, %arg5: memref<1x256xf32, #tpu.memory_space<vmem>>, %arg6: memref<16x256xf32, #tpu.memory_space<vmem>>) attributes {dimension_semantics = [#tpu.dimension_semantics<parallel>], iteration_bounds = array<i64: 1>, scalar_prefetch = 0 : i64, scratch_operands = 0 : i64, tpu.core_type = #tpu.core_type<tc>, window_params = [{transform_indices = @transform_0, window_bounds = array<i64: 16, 256>}, {pipeline_mode = #tpu.pipeline_mode<synchronous>, transform_indices = @transform_1, window_bounds = array<i64: 256, 256>}, {pipeline_mode = #tpu.pipeline_mode<synchronous>, transform_indices = @transform_2, window_bounds = array<i64: 1, 256>}, {pipeline_mode = #tpu.pipeline_mode<synchronous>, transform_indices = @transform_3, window_bounds = array<i64: 256, 256>}, {pipeline_mode = #tpu.pipeline_mode<synchronous>, transform_indices = @transform_4, window_bounds = array<i64: 1, 256>}, {transform_indices = @transform_5, window_bounds = array<i64: 16, 256>}]} {
    %c0 = arith.constant 0 : index
    %c0_0 = arith.constant 0 : index
    %0 = vector.load %arg1[%c0, %c0_0] : memref<16x256xbf16, #tpu.memory_space<vmem>>, vector<16x256xbf16>
    %c0_1 = arith.constant 0 : index
    %c0_2 = arith.constant 0 : index
    %1 = vector.load %arg2[%c0_1, %c0_2] : memref<256x256xbf16, #tpu.memory_space<vmem>>, vector<256x256xbf16>
    %cst = arith.constant dense<0.000000e+00> : vector<16x256xf32>
    %2 = tpu.matmul %0, %1, %cst {dimension_numbers = #tpu.dot_dimension_numbers<[1], [0], [0], [1], [0, 0, 1, 1], [], []>} : vector<16x256xbf16>, vector<256x256xbf16>, vector<16x256xf32> -> vector<16x256xf32>
    %c0_3 = arith.constant 0 : index
    %c0_4 = arith.constant 0 : index
    %3 = vector.load %arg3[%c0_3, %c0_4] : memref<1x256xf32, #tpu.memory_space<vmem>>, vector<1x256xf32>
    %4 = vector.broadcast %3 : vector<1x256xf32> to vector<16x256xf32>
    %5 = arith.addf %2, %4 : vector<16x256xf32>
    %cst_5 = arith.constant 5.000000e-01 : f32
    %6 = vector.broadcast %cst_5 : f32 to vector<16x256xf32>
    %7 = arith.mulf %6, %5 : vector<16x256xf32>
    %cst_6 = arith.constant 0.707106769 : f32
    %8 = vector.broadcast %cst_6 : f32 to vector<16x256xf32>
    %9 = arith.mulf %5, %8 : vector<16x256xf32>
    %10 = math.erf %9 : vector<16x256xf32>
    %cst_7 = arith.constant 1.000000e+00 : f32
    %11 = vector.broadcast %cst_7 : f32 to vector<16x256xf32>
    %12 = arith.addf %11, %10 : vector<16x256xf32>
    %13 = arith.mulf %7, %12 : vector<16x256xf32>
    %14 = arith.truncf %13 : vector<16x256xf32> to vector<16x256xbf16>
    %c0_8 = arith.constant 0 : index
    %c0_9 = arith.constant 0 : index
    %15 = vector.load %arg4[%c0_8, %c0_9] : memref<256x256xbf16, #tpu.memory_space<vmem>>, vector<256x256xbf16>
    %cst_10 = arith.constant dense<0.000000e+00> : vector<16x256xf32>
    %16 = tpu.matmul %14, %15, %cst_10 {dimension_numbers = #tpu.dot_dimension_numbers<[1], [0], [0], [1], [0, 0, 1, 1], [], []>} : vector<16x256xbf16>, vector<256x256xbf16>, vector<16x256xf32> -> vector<16x256xf32>
    %c0_11 = arith.constant 0 : index
    %c0_12 = arith.constant 0 : index
    %17 = vector.load %arg5[%c0_11, %c0_12] : memref<1x256xf32, #tpu.memory_space<vmem>>, vector<1x256xf32>
    %18 = vector.broadcast %17 : vector<1x256xf32> to vector<16x256xf32>
    %19 = arith.addf %16, %18 : vector<16x256xf32>
    %c0_13 = arith.constant 0 : index
    %c0_14 = arith.constant 0 : index
    %20 = vector.load %arg6[%c0_13, %c0_14] : memref<16x256xf32, #tpu.memory_space<vmem>>, vector<16x256xf32>
    tpu.vector_store %arg6[%c0_13, %c0_14], %19 {strides = array<i32>} : memref<16x256xf32, #tpu.memory_space<vmem>>, vector<16x256xf32>,
    return
  }
  func.func @transform_0(%arg0: i32) -> (i32, i32) {
    %c0_i32 = arith.constant 0 : i32
    %c0_i32_0 = arith.constant 0 : i32
    return %arg0, %c0_i32 : i32, i32
  }
  func.func @transform_1(%arg0: i32) -> (i32, i32) {
    %c0_i32 = arith.constant 0 : i32
    %c0_i32_0 = arith.constant 0 : i32
    %c0_i32_1 = arith.constant 0 : i32
    return %c0_i32, %c0_i32_0 : i32, i32
  }
  func.func @transform_2(%arg0: i32) -> (i32, i32) {
    %c0_i32 = arith.constant 0 : i32
    %c0_i32_0 = arith.constant 0 : i32
    %c0_i32_1 = arith.constant 0 : i32
    return %c0_i32, %c0_i32_0 : i32, i32
  }
  func.func @transform_3(%arg0: i32) -> (i32, i32) {
    %c0_i32 = arith.constant 0 : i32
    %c0_i32_0 = arith.constant 0 : i32
    %c0_i32_1 = arith.constant 0 : i32
    return %c0_i32, %c0_i32_0 : i32, i32
  }
  func.func @transform_4(%arg0: i32) -> (i32, i32) {
    %c0_i32 = arith.constant 0 : i32
    %c0_i32_0 = arith.constant 0 : i32
    %c0_i32_1 = arith.constant 0 : i32
    return %c0_i32, %c0_i32_0 : i32, i32
  }
  func.func @transform_5(%arg0: i32) -> (i32, i32) {
    %c0_i32 = arith.constant 0 : i32
    %c0_i32_0 = arith.constant 0 : i32
    return %arg0, %c0_i32 : i32, i32
  }
}

</mosaic_0001>

<llo_original>
// kernel: mlp_forward.1
$region0: #{mlp_forward.1}
  #allocation0 [shape = 'u32[]', space=smem, size = 0x4, offset = 0x4, fixed_abs, tag = 'smem constant byte address 0x4 - core index']
  #allocation1 [shape = 'u32[144,128]{1,0:T(1,128)}', space=vmem, size = 0x12000, scoped, tag = 'internal scratch']
  %s0 = inlined_call_operand.vmem [shape: bf16[16,256], index: 0, kind: input, shape index: {}]
  %s1 = inlined_call_operand.hbm [shape: bf16[256,256], index: 1, kind: input, shape index: {}]
  %s2 = inlined_call_operand.vmem [shape: f32[1,256], index: 2, kind: input, shape index: {}]
  %s3 = inlined_call_operand.hbm [shape: bf16[256,256], index: 3, kind: input, shape index: {}]
  %s4 = inlined_call_operand.vmem [shape: f32[1,256], index: 4, kind: input, shape index: {}]
  %s5 = inlined_call_operand.vmem [shape: f32[16,256], index: 5, kind: output, shape index: {}]
  %s6 = sld [smem:[#allocation0]]
  $region38: #{mlp_forward.1} parent=0
    _
  %s8 = ssub.s32 1, %s6
  %s9 = scalar_select 0, %s8, %s6
  $region1: #{mlp_forward.1} parent=0
    #allocation2 [shape = 'u8[131072]{0}', space=vmem, size = 0x20000, scoped, tag = 'input window, operand 1, single buffered']
    #allocation3 [shape = 's32[1]{0}', space=sflag, size = 0x4, scoped, tag = 'scoped memory for mlp_forward.1']
    #allocation4 [shape = 'u8[131072]{0}', space=vmem, size = 0x20000, scoped, tag = 'input window, operand 3, single buffered']
    #allocation5 [shape = 's32[1]{0}', space=sflag, size = 0x4, scoped, tag = 'scoped memory for mlp_forward.1']
    %10 = vsyncpa [#allocation3], 0
    %11 = vsyncpa [#allocation5], 0
    // Predicated region
    $region2: #{mlp_forward.1} parent=1 // pred_check
      _
    $region3: #{mlp_forward.1} parent=1 // pred_check_branch
      %13 = sbr.rel (0) target = $region5
    $region4: #{mlp_forward.1} parent=1 // pred_region
      _
    $region5: #{mlp_forward.1} parent=1 // pred_fallthru
      _
    // Predicated region
    $region6: #{mlp_forward.1} parent=1 // pred_check
      _
    $region7: #{mlp_forward.1} parent=1 // pred_check_branch
      %15 = sbr.rel (0) target = $region9
    $region8: #{mlp_forward.1} parent=1 // pred_region
      %s17 = ssub.s32 4096, 4096
      %18 = vsyncadd [#allocation3], %s17
      %s19 = sshll.u32 [#allocation2], 4
      %s20 = int_to_ptr.vmem [resolvable:$true] %s19
      %25 = dma.hbm_to_vmem [thread:$0]  %s1, 4096, %s20, [#allocation3], 128, 128, 8
    $region9: #{mlp_forward.1} parent=1 // pred_fallthru
      _
    // Predicated region
    $region10: #{mlp_forward.1} parent=1 // pred_check
      _
    $region11: #{mlp_forward.1} parent=1 // pred_check_branch
      %27 = sbr.rel (0) target = $region13
    $region12: #{mlp_forward.1} parent=1 // pred_region
      _
    $region13: #{mlp_forward.1} parent=1 // pred_fallthru
      _
    // Predicated region
    $region14: #{mlp_forward.1} parent=1 // pred_check
      _
    $region15: #{mlp_forward.1} parent=1 // pred_check_branch
      %29 = sbr.rel (0) target = $region17
    $region16: #{mlp_forward.1} parent=1 // pred_region
      %s31 = ssub.s32 4096, 4096
      %32 = vsyncadd [#allocation5], %s31
      %s33 = sshll.u32 [#allocation4], 4
      %s34 = int_to_ptr.vmem [resolvable:$true] %s33
      %39 = dma.hbm_to_vmem [thread:$0]  %s3, 4096, %s34, [#allocation5], 128, 128, 8
    $region17: #{mlp_forward.1} parent=1 // pred_fallthru
      _
    // Predicated region
    $region18: #{mlp_forward.1} parent=1 // pred_check
      _
    $region19: #{mlp_forward.1} parent=1 // pred_check_branch
      %41 = sbr.rel (0) target = $region21
    $region20: #{mlp_forward.1} parent=1 // pred_region
      _
    $region21: #{mlp_forward.1} parent=1 // pred_fallthru
      _
    // Predicated region
    $region22: #{mlp_forward.1} parent=1 // pred_check
      _
    $region23: #{mlp_forward.1} parent=1 // pred_check_branch
      %43 = sbr.rel (0) target = $region25
    $region24: #{mlp_forward.1} parent=1 // pred_region
      %44 = dma.done [#allocation3], 4096
    $region25: #{mlp_forward.1} parent=1 // pred_fallthru
      _
    // Predicated region
    $region26: #{mlp_forward.1} parent=1 // pred_check
      _
    $region27: #{mlp_forward.1} parent=1 // pred_check_branch
      %46 = sbr.rel (0) target = $region29
    $region28: #{mlp_forward.1} parent=1 // pred_region
      %47 = dma.done [#allocation5], 4096
    $region29: #{mlp_forward.1} parent=1 // pred_fallthru
      _
    %v48 = vld [vmem:[%s0] sm:$0xff]
    %v49 = vld [vmem:[%s0 + $0x8] sm:$0xff]
    %v50 = vld [vmem:[#allocation2] sm:$0xff]
    %v51 = vld [vmem:[#allocation2 + $0x8] sm:$0xff]
    %v52 = vld [vmem:[#allocation2 + $0x10] sm:$0xff]
    %v53 = vld [vmem:[#allocation2 + $0x18] sm:$0xff]
    %v54 = vld [vmem:[#allocation2 + $0x20] sm:$0xff]
    %v55 = vld [vmem:[#allocation2 + $0x28] sm:$0xff]
    %v56 = vld [vmem:[#allocation2 + $0x30] sm:$0xff]
    %v57 = vld [vmem:[#allocation2 + $0x38] sm:$0xff]
    %v58 = vld [vmem:[#allocation2 + $0x40] sm:$0xff]
    %v59 = vld [vmem:[#allocation2 + $0x48] sm:$0xff]
    %v60 = vld [vmem:[#allocation2 + $0x50] sm:$0xff]
    %v61 = vld [vmem:[#allocation2 + $0x58] sm:$0xff]
    %v62 = vld [vmem:[#allocation2 + $0x60] sm:$0xff]
    %v63 = vld [vmem:[#allocation2 + $0x68] sm:$0xff]
    %v64 = vld [vmem:[#allocation2 + $0x70] sm:$0xff]
    %v65 = vld [vmem:[#allocation2 + $0x78] sm:$0xff]
    %v66 = vld [vmem:[#allocation2 + $0x80] sm:$0xff]
    %v67 = vld [vmem:[#allocation2 + $0x88] sm:$0xff]
    %v68 = vld [vmem:[#allocation2 + $0x90] sm:$0xff]
    %v69 = vld [vmem:[#allocation2 + $0x98] sm:$0xff]
    %v70 = vld [vmem:[#allocation2 + $0xa0] sm:$0xff]
    %v71 = vld [vmem:[#allocation2 + $0xa8] sm:$0xff]
    %v72 = vld [vmem:[#allocation2 + $0xb0] sm:$0xff]
    %v73 = vld [vmem:[#allocation2 + $0xb8] sm:$0xff]
    %v74 = vld [vmem:[#allocation2 + $0xc0] sm:$0xff]
    %v75 = vld [vmem:[#allocation2 + $0xc8] sm:$0xff]
    %v76 = vld [vmem:[#allocation2 + $0xd0] sm:$0xff]
    %v77 = vld [vmem:[#allocation2 + $0xd8] sm:$0xff]
    %v78 = vld [vmem:[#allocation2 + $0xe0] sm:$0xff]
    %v79 = vld [vmem:[#allocation2 + $0xe8] sm:$0xff]
    %v80 = vld [vmem:[#allocation2 + $0xf0] sm:$0xff]
    %v81 = vld [vmem:[#allocation2 + $0xf8] sm:$0xff]
    %v82 = vld [vmem:[%s2] sm:$0x3]
    %v84 = vlaneseq
    %v85 = vshrl.u32 %v84, 7
    %v86 = vsub.s32 0, %v85
    %v87 = vrot.slane %v82, %v86
    %v88 = vlaneseq
    %v89 = vshrl.u32 %v88, 7
    %v90 = vsub.s32 1, %v89
    %v91 = vrot.slane %v82, %v90
    %v96 = vunpack.c.l.b16 %v48
    %v97 = vunpack.c.h.b16 %v48
    %v98 = vunpack.c.l.b16 %v49
    %v99 = vunpack.c.h.b16 %v49
    %v100 = vpack.c.b16 %v98, %v96
    %v101 = vpack.c.b16 %v99, %v97
    %v136 = vunpack.c.l.b16 %v50
    %v137 = vunpack.c.h.b16 %v50
    %v138 = vunpack.c.l.b16 %v51
    %v139 = vunpack.c.h.b16 %v51
    %v140 = vunpack.c.l.b16 %v52
    %v141 = vunpack.c.h.b16 %v52
    %v142 = vunpack.c.l.b16 %v53
    %v143 = vunpack.c.h.b16 %v53
    %v144 = vunpack.c.l.b16 %v54
    %v145 = vunpack.c.h.b16 %v54
    %v146 = vunpack.c.l.b16 %v55
    %v147 = vunpack.c.h.b16 %v55
    %v148 = vunpack.c.l.b16 %v56
    %v149 = vunpack.c.h.b16 %v56
    %v150 = vunpack.c.l.b16 %v57
    %v151 = vunpack.c.h.b16 %v57
    %v152 = vunpack.c.l.b16 %v58
    %v153 = vunpack.c.h.b16 %v58
    %v154 = vunpack.c.l.b16 %v59
    %v155 = vunpack.c.h.b16 %v59
    %v156 = vunpack.c.l.b16 %v60
    %v157 = vunpack.c.h.b16 %v60
    %v158 = vunpack.c.l.b16 %v61
    %v159 = vunpack.c.h.b16 %v61
    %v160 = vunpack.c.l.b16 %v62
    %v161 = vunpack.c.h.b16 %v62
    %v162 = vunpack.c.l.b16 %v63
    %v163 = vunpack.c.h.b16 %v63
    %v164 = vunpack.c.l.b16 %v64
    %v165 = vunpack.c.h.b16 %v64
    %v166 = vunpack.c.l.b16 %v65
    %v167 = vunpack.c.h.b16 %v65
    %v168 = vunpack.c.l.b16 %v66
    %v169 = vunpack.c.h.b16 %v66
    %v170 = vunpack.c.l.b16 %v67
    %v171 = vunpack.c.h.b16 %v67
    %v172 = vunpack.c.l.b16 %v68
    %v173 = vunpack.c.h.b16 %v68
    %v174 = vunpack.c.l.b16 %v69
    %v175 = vunpack.c.h.b16 %v69
    %v176 = vunpack.c.l.b16 %v70
    %v177 = vunpack.c.h.b16 %v70
    %v178 = vunpack.c.l.b16 %v71
    %v179 = vunpack.c.h.b16 %v71
    %v180 = vunpack.c.l.b16 %v72
    %v181 = vunpack.c.h.b16 %v72
    %v182 = vunpack.c.l.b16 %v73
    %v183 = vunpack.c.h.b16 %v73
    %v184 = vunpack.c.l.b16 %v74
    %v185 = vunpack.c.h.b16 %v74
    %v186 = vunpack.c.l.b16 %v75
    %v187 = vunpack.c.h.b16 %v75
    %v188 = vunpack.c.l.b16 %v76
    %v189 = vunpack.c.h.b16 %v76
    %v190 = vunpack.c.l.b16 %v77
    %v191 = vunpack.c.h.b16 %v77
    %v192 = vunpack.c.l.b16 %v78
    %v193 = vunpack.c.h.b16 %v78
    %v194 = vunpack.c.l.b16 %v79
    %v195 = vunpack.c.h.b16 %v79
    %v196 = vunpack.c.l.b16 %v80
    %v197 = vunpack.c.h.b16 %v80
    %v198 = vunpack.c.l.b16 %v81
    %v199 = vunpack.c.h.b16 %v81
    %v200 = vpack.c.b16 %v138, %v136
    %v201 = vpack.c.b16 %v139, %v137
    %v202 = vpack.c.b16 %v142, %v140
    %v203 = vpack.c.b16 %v143, %v141
    %v204 = vpack.c.b16 %v146, %v144
    %v205 = vpack.c.b16 %v147, %v145
    %v206 = vpack.c.b16 %v150, %v148
    %v207 = vpack.c.b16 %v151, %v149
    %v208 = vpack.c.b16 %v154, %v152
    %v209 = vpack.c.b16 %v155, %v153
    %v210 = vpack.c.b16 %v158, %v156
    %v211 = vpack.c.b16 %v159, %v157
    %v212 = vpack.c.b16 %v162, %v160
    %v213 = vpack.c.b16 %v163, %v161
    %v214 = vpack.c.b16 %v166, %v164
    %v215 = vpack.c.b16 %v167, %v165
    %v216 = vpack.c.b16 %v170, %v168
    %v217 = vpack.c.b16 %v171, %v169
    %v218 = vpack.c.b16 %v174, %v172
    %v219 = vpack.c.b16 %v175, %v173
    %v220 = vpack.c.b16 %v178, %v176
    %v221 = vpack.c.b16 %v179, %v177
    %v222 = vpack.c.b16 %v182, %v180
    %v223 = vpack.c.b16 %v183, %v181
    %v224 = vpack.c.b16 %v186, %v184
    %v225 = vpack.c.b16 %v187, %v185
    %v226 = vpack.c.b16 %v190, %v188
    %v227 = vpack.c.b16 %v191, %v189
    %v228 = vpack.c.b16 %v194, %v192
    %v229 = vpack.c.b16 %v195, %v193
    %v230 = vpack.c.b16 %v198, %v196
    %v231 = vpack.c.b16 %v199, %v197
    %264 = vmatprep.subr.bf16.mxu0 %v215
    %265 = vmatpush1.bf16.msra.mxu0 %v214
    %266 = vmatprep.subr.bf16.mxu0 %v213
    %267 = vmatpush1.bf16.msra.mxu0 %v212
    %268 = vmatprep.subr.bf16.mxu0 %v211
    %269 = vmatpush1.bf16.msra.mxu0 %v210
    %270 = vmatprep.subr.bf16.mxu0 %v209
    %271 = vmatpush1.bf16.msra.mxu0 %v208
    %272 = vmatprep.subr.bf16.mxu0 %v207
    %273 = vmatpush1.bf16.msra.mxu0 %v206
    %274 = vmatprep.subr.bf16.mxu0 %v205
    %275 = vmatpush1.bf16.msra.mxu0 %v204
    %276 = vmatprep.subr.bf16.mxu0 %v203
    %277 = vmatpush1.bf16.msra.mxu0 %v202
    %278 = vmatprep.subr.bf16.mxu0 %v201
    %279 = vmatpush1.bf16.msra.mxu0 %v200
    %280 = vmatprep.subr.bf16.mxu0 %v231
    %281 = vmatpush2.bf16.msra.mxu0 %v230
    %282 = vmatprep.subr.bf16.mxu0 %v229
    %283 = vmatpush2.bf16.msra.mxu0 %v228
    %284 = vmatprep.subr.bf16.mxu0 %v227
    %285 = vmatpush2.bf16.msra.mxu0 %v226
    %286 = vmatprep.subr.bf16.mxu0 %v225
    %287 = vmatpush2.bf16.msra.mxu0 %v224
    %288 = vmatprep.subr.bf16.mxu0 %v223
    %289 = vmatpush2.bf16.msra.mxu0 %v222
    %290 = vmatprep.subr.bf16.mxu0 %v221
    %291 = vmatpush2.bf16.msra.mxu0 %v220
    %292 = vmatprep.subr.bf16.mxu0 %v219
    %293 = vmatpush2.bf16.msra.mxu0 %v218
    %294 = vmatprep.subr.bf16.mxu0 %v217
    %295 = vmatpush2.bf16.msra.mxu0 %v216
    %296 = vmatprep.mubr.bf16.mxu0 %v101
    %297 = vmatmul.mubr.bf16.gmra.mxu0 %v100
    %v298 = vpop.f32.mrf.mxu0
    %v299 = vadd.f32 %v87, %v298
    %v300 = vpop.f32.mrf.mxu0
    %v301 = vadd.f32 %v91, %v300
    %v302 = vpop.f32.mrf.mxu0
    %v303 = vadd.f32 %v87, %v302
    %v304 = vpop.f32.mrf.mxu0
    %v305 = vadd.f32 %v91, %v304
    %306 = vdwg.mxu0
    %v307 = vmul.f32 %v299, 0.5
    %v308 = vmul.f32 %v301, 0.5
    %v309 = vmul.f32 %v303, 0.5
    %v310 = vmul.f32 %v305, 0.5
    %v311 = vmul.f32 %v299, 0.70710677
    %v312 = vmul.f32 %v301, 0.70710677
    %v313 = vmul.f32 %v303, 0.70710677
    %v314 = vmul.f32 %v305, 0.70710677
    %v315 = verf.f32.pop %v311
    %v316 = verf.f32.pop %v312
    %v317 = verf.f32.pop %v313
    %v318 = verf.f32.pop %v314
    %v319 = vadd.f32 %v315, 1.0
    %v320 = vadd.f32 %v316, 1.0
    %v321 = vadd.f32 %v317, 1.0
    %v322 = vadd.f32 %v318, 1.0
    %v323 = vmul.f32 %v307, %v319
    %v324 = vmul.f32 %v308, %v320
    %v325 = vmul.f32 %v309, %v321
    %v326 = vmul.f32 %v310, %v322
    %v327 = vpack.c.bf16 %v325, %v323
    %v328 = vpack.c.bf16 %v326, %v324
    %v329 = vld [vmem:[#allocation4] sm:$0xff]
    %v330 = vld [vmem:[#allocation4 + $0x8] sm:$0xff]
    %v331 = vld [vmem:[#allocation4 + $0x10] sm:$0xff]
    %v332 = vld [vmem:[#allocation4 + $0x18] sm:$0xff]
    %v333 = vld [vmem:[#allocation4 + $0x20] sm:$0xff]
    %v334 = vld [vmem:[#allocation4 + $0x28] sm:$0xff]
    %v335 = vld [vmem:[#allocation4 + $0x30] sm:$0xff]
    %v336 = vld [vmem:[#allocation4 + $0x38] sm:$0xff]
    %v337 = vld [vmem:[#allocation4 + $0x40] sm:$0xff]
    %v338 = vld [vmem:[#allocation4 + $0x48] sm:$0xff]
    %v339 = vld [vmem:[#allocation4 + $0x50] sm:$0xff]
    %v340 = vld [vmem:[#allocation4 + $0x58] sm:$0xff]
    %v341 = vld [vmem:[#allocation4 + $0x60] sm:$0xff]
    %v342 = vld [vmem:[#allocation4 + $0x68] sm:$0xff]
    %v343 = vld [vmem:[#allocation4 + $0x70] sm:$0xff]
    %v344 = vld [vmem:[#allocation4 + $0x78] sm:$0xff]
    %v345 = vld [vmem:[#allocation4 + $0x80] sm:$0xff]
    %v346 = vld [vmem:[#allocation4 + $0x88] sm:$0xff]
    %v347 = vld [vmem:[#allocation4 + $0x90] sm:$0xff]
    %v348 = vld [vmem:[#allocation4 + $0x98] sm:$0xff]
    %v349 = vld [vmem:[#allocation4 + $0xa0] sm:$0xff]
    %v350 = vld [vmem:[#allocation4 + $0xa8] sm:$0xff]
    %v351 = vld [vmem:[#allocation4 + $0xb0] sm:$0xff]
    %v352 = vld [vmem:[#allocation4 + $0xb8] sm:$0xff]
    %v353 = vld [vmem:[#allocation4 + $0xc0] sm:$0xff]
    %v354 = vld [vmem:[#allocation4 + $0xc8] sm:$0xff]
    %v355 = vld [vmem:[#allocation4 + $0xd0] sm:$0xff]
    %v356 = vld [vmem:[#allocation4 + $0xd8] sm:$0xff]
    %v357 = vld [vmem:[#allocation4 + $0xe0] sm:$0xff]
    %v358 = vld [vmem:[#allocation4 + $0xe8] sm:$0xff]
    %v359 = vld [vmem:[#allocation4 + $0xf0] sm:$0xff]
    %v360 = vld [vmem:[#allocation4 + $0xf8] sm:$0xff]
    %v361 = vld [vmem:[%s4] sm:$0x3]
    %v363 = vlaneseq
    %v364 = vshrl.u32 %v363, 7
    %v365 = vsub.s32 0, %v364
    %v366 = vrot.slane %v361, %v365
    %v367 = vlaneseq
    %v368 = vshrl.u32 %v367, 7
    %v369 = vsub.s32 1, %v368
    %v370 = vrot.slane %v361, %v369
    %v405 = vunpack.c.l.b16 %v329
    %v406 = vunpack.c.h.b16 %v329
    %v407 = vunpack.c.l.b16 %v330
    %v408 = vunpack.c.h.b16 %v330
    %v409 = vunpack.c.l.b16 %v331
    %v410 = vunpack.c.h.b16 %v331
    %v411 = vunpack.c.l.b16 %v332
    %v412 = vunpack.c.h.b16 %v332
    %v413 = vunpack.c.l.b16 %v333
    %v414 = vunpack.c.h.b16 %v333
    %v415 = vunpack.c.l.b16 %v334
    %v416 = vunpack.c.h.b16 %v334
    %v417 = vunpack.c.l.b16 %v335
    %v418 = vunpack.c.h.b16 %v335
    %v419 = vunpack.c.l.b16 %v336
    %v420 = vunpack.c.h.b16 %v336
    %v421 = vunpack.c.l.b16 %v337
    %v422 = vunpack.c.h.b16 %v337
    %v423 = vunpack.c.l.b16 %v338
    %v424 = vunpack.c.h.b16 %v338
    %v425 = vunpack.c.l.b16 %v339
    %v426 = vunpack.c.h.b16 %v339
    %v427 = vunpack.c.l.b16 %v340
    %v428 = vunpack.c.h.b16 %v340
    %v429 = vunpack.c.l.b16 %v341
    %v430 = vunpack.c.h.b16 %v341
    %v431 = vunpack.c.l.b16 %v342
    %v432 = vunpack.c.h.b16 %v342
    %v433 = vunpack.c.l.b16 %v343
    %v434 = vunpack.c.h.b16 %v343
    %v435 = vunpack.c.l.b16 %v344
    %v436 = vunpack.c.h.b16 %v344
    %v437 = vunpack.c.l.b16 %v345
    %v438 = vunpack.c.h.b16 %v345
    %v439 = vunpack.c.l.b16 %v346
    %v440 = vunpack.c.h.b16 %v346
    %v441 = vunpack.c.l.b16 %v347
    %v442 = vunpack.c.h.b16 %v347
    %v443 = vunpack.c.l.b16 %v348
    %v444 = vunpack.c.h.b16 %v348
    %v445 = vunpack.c.l.b16 %v349
    %v446 = vunpack.c.h.b16 %v349
    %v447 = vunpack.c.l.b16 %v350
    %v448 = vunpack.c.h.b16 %v350
    %v449 = vunpack.c.l.b16 %v351
    %v450 = vunpack.c.h.b16 %v351
    %v451 = vunpack.c.l.b16 %v352
    %v452 = vunpack.c.h.b16 %v352
    %v453 = vunpack.c.l.b16 %v353
    %v454 = vunpack.c.h.b16 %v353
    %v455 = vunpack.c.l.b16 %v354
    %v456 = vunpack.c.h.b16 %v354
    %v457 = vunpack.c.l.b16 %v355
    %v458 = vunpack.c.h.b16 %v355
    %v459 = vunpack.c.l.b16 %v356
    %v460 = vunpack.c.h.b16 %v356
    %v461 = vunpack.c.l.b16 %v357
    %v462 = vunpack.c.h.b16 %v357
    %v463 = vunpack.c.l.b16 %v358
    %v464 = vunpack.c.h.b16 %v358
    %v465 = vunpack.c.l.b16 %v359
    %v466 = vunpack.c.h.b16 %v359
    %v467 = vunpack.c.l.b16 %v360
    %v468 = vunpack.c.h.b16 %v360
    %v469 = vpack.c.b16 %v407, %v405
    %v470 = vpack.c.b16 %v408, %v406
    %v471 = vpack.c.b16 %v411, %v409
    %v472 = vpack.c.b16 %v412, %v410
    %v473 = vpack.c.b16 %v415, %v413
    %v474 = vpack.c.b16 %v416, %v414
    %v475 = vpack.c.b16 %v419, %v417
    %v476 = vpack.c.b16 %v420, %v418
    %v477 = vpack.c.b16 %v423, %v421
    %v478 = vpack.c.b16 %v424, %v422
    %v479 = vpack.c.b16 %v427, %v425
    %v480 = vpack.c.b16 %v428, %v426
    %v481 = vpack.c.b16 %v431, %v429
    %v482 = vpack.c.b16 %v432, %v430
    %v483 = vpack.c.b16 %v435, %v433
    %v484 = vpack.c.b16 %v436, %v434
    %v485 = vpack.c.b16 %v439, %v437
    %v486 = vpack.c.b16 %v440, %v438
    %v487 = vpack.c.b16 %v443, %v441
    %v488 = vpack.c.b16 %v444, %v442
    %v489 = vpack.c.b16 %v447, %v445
    %v490 = vpack.c.b16 %v448, %v446
    %v491 = vpack.c.b16 %v451, %v449
    %v492 = vpack.c.b16 %v452, %v450
    %v493 = vpack.c.b16 %v455, %v453
    %v494 = vpack.c.b16 %v456, %v454
    %v495 = vpack.c.b16 %v459, %v457
    %v496 = vpack.c.b16 %v460, %v458
    %v497 = vpack.c.b16 %v463, %v461
    %v498 = vpack.c.b16 %v464, %v462
    %v499 = vpack.c.b16 %v467, %v465
    %v500 = vpack.c.b16 %v468, %v466
    %533 = vmatprep.subr.bf16.mxu0 %v484
    %534 = vmatpush1.bf16.msra.mxu0 %v483
    %535 = vmatprep.subr.bf16.mxu0 %v482
    %536 = vmatpush1.bf16.msra.mxu0 %v481
    %537 = vmatprep.subr.bf16.mxu0 %v480
    %538 = vmatpush1.bf16.msra.mxu0 %v479
    %539 = vmatprep.subr.bf16.mxu0 %v478
    %540 = vmatpush1.bf16.msra.mxu0 %v477
    %541 = vmatprep.subr.bf16.mxu0 %v476
    %542 = vmatpush1.bf16.msra.mxu0 %v475
    %543 = vmatprep.subr.bf16.mxu0 %v474
    %544 = vmatpush1.bf16.msra.mxu0 %v473
    %545 = vmatprep.subr.bf16.mxu0 %v472
    %546 = vmatpush1.bf16.msra.mxu0 %v471
    %547 = vmatprep.subr.bf16.mxu0 %v470
    %548 = vmatpush1.bf16.msra.mxu0 %v469
    %549 = vmatprep.subr.bf16.mxu0 %v500
    %550 = vmatpush2.bf16.msra.mxu0 %v499
    %551 = vmatprep.subr.bf16.mxu0 %v498
    %552 = vmatpush2.bf16.msra.mxu0 %v497
    %553 = vmatprep.subr.bf16.mxu0 %v496
    %554 = vmatpush2.bf16.msra.mxu0 %v495
    %555 = vmatprep.subr.bf16.mxu0 %v494
    %556 = vmatpush2.bf16.msra.mxu0 %v493
    %557 = vmatprep.subr.bf16.mxu0 %v492
    %558 = vmatpush2.bf16.msra.mxu0 %v491
    %559 = vmatprep.subr.bf16.mxu0 %v490
    %560 = vmatpush2.bf16.msra.mxu0 %v489
    %561 = vmatprep.subr.bf16.mxu0 %v488
    %562 = vmatpush2.bf16.msra.mxu0 %v487
    %563 = vmatprep.subr.bf16.mxu0 %v486
    %564 = vmatpush2.bf16.msra.mxu0 %v485
    %565 = vmatprep.mubr.bf16.mxu0 %v328
    %566 = vmatmul.mubr.bf16.gmra.mxu0 %v327
    %v567 = vpop.f32.mrf.mxu0
    %v568 = vadd.f32 %v366, %v567
    %v569 = vpop.f32.mrf.mxu0
    %v570 = vadd.f32 %v370, %v569
    %v571 = vpop.f32.mrf.mxu0
    %v572 = vadd.f32 %v366, %v571
    %v573 = vpop.f32.mrf.mxu0
    %v574 = vadd.f32 %v370, %v573
    %575 = vdwg.mxu0
    %576 = vst [vmem:[%s5] sm:$0xff] %v568
    %577 = vst [vmem:[%s5 + $0x8] sm:$0xff] %v570
    %578 = vst [vmem:[%s5 + $0x10] sm:$0xff] %v572
    %579 = vst [vmem:[%s5 + $0x18] sm:$0xff] %v574
    // Predicated region
    $region30: #{mlp_forward.1} parent=1 // pred_check
      _
    $region31: #{mlp_forward.1} parent=1 // pred_check_branch
      %581 = sbr.rel (0) target = $region33
    $region32: #{mlp_forward.1} parent=1 // pred_region
      _
    $region33: #{mlp_forward.1} parent=1 // pred_fallthru
      _
    // Predicated region
    $region34: #{mlp_forward.1} parent=1 // pred_check
      _
    $region35: #{mlp_forward.1} parent=1 // pred_check_branch
      %583 = sbr.rel (0) target = $region37
    $region36: #{mlp_forward.1} parent=1 // pred_region
      _
    $region37: #{mlp_forward.1} parent=1 // pred_fallthru
      _
    %584 = vsyncpa [#allocation3], 1
    %585 = vsyncpa [#allocation5], 1

</llo_original>
